<compile_context>
chip_gen: v5e
topology: v5e:2x2
jax: 0.10.0
libtpu: 0.0.40
codegen_flags: <defaults>
</compile_context>

<pallas_src>
import functools

import jax
import jax.numpy as jnp
from jax import lax
from jax.experimental import pallas as pl
from jax.experimental.pallas import tpu as pltpu


def upscale_kernel(x_ref, w_ref, b_ref, o_ref, *, wp, lp):
    """One batch image per grid step; all 4 parity phases fused on the M dim.

    x_ref: (1, Cin, FL)      bf16  zero-padded input image, HW flattened
    w_ref: (4*Cout, 9*Cin)   bf16  per-phase tap weights, phases stacked on M (BN folded)
    b_ref: (4*Cout, 1)       f32   folded conv bias + BN bias, replicated per phase
    o_ref: (1, 4*Cout, Lp)   bf16  four output phases, spatially flattened, lane-dense
    """
    # im2col as a value: each 3x3 tap window is a contiguous flat slice of the
    # padded image (row pitch `wp`); stack the 9 windows on the contraction dim
    # entirely in vregs (no VMEM scratch, no misaligned RMW stores).
    taps = [x_ref[0, :, pl.ds(dh * wp + dw, lp)] for dh in range(3) for dw in range(3)]
    im2col = jnp.concatenate(taps, axis=0)                   # (9*Cin, Lp) bf16

    # One fat MXU matmul: (4*Cout, 9*Cin) @ (9*Cin, Lp), f32 accumulation.
    acc = lax.dot_general(
        w_ref[...], im2col,
        dimension_numbers=(((1,), (0,)), ((), ())),
        preferred_element_type=jnp.float32)                  # (4*Cout, Lp) f32

    y = acc + b_ref[...]                                     # conv bias + BN affine (folded)
    y = jnp.where(y >= 0, y, 0.1 * y)                        # LeakyReLU(0.1), f32 epilogue
    o_ref[0] = y.astype(o_ref.dtype)                         # Dropout2d: identity (eval)


def fold_upscale_params(w_t, b_conv, gamma, beta, run_mean, run_var, *, eps=1e-5):
    """Fold BN into conv weights/bias and regroup into fused per-phase tap blocks.

    w_t: (Cin, Cout, 5, 5) nn.ConvTranspose2d weight layout.
    Returns (w_all (4*Cout, 9*Cin) bf16, bias_all (4*Cout, 1) f32).
    Hoisted out of the per-forward path (weights are static).
    """
    Cin, Cout, K, K2 = w_t.shape
    assert K == 5 and K2 == 5
    scale = gamma / jnp.sqrt(run_var + eps)                                  # (Cout,)
    bias = (b_conv - run_mean) * scale + beta                                # (Cout,)
    # w_flip[kh, kw, co, ci] = scale[co] * w_t[ci, co, K-1-kh, K-1-kw]
    w_flip = jnp.transpose(w_t, (2, 3, 1, 0))[::-1, ::-1] * scale[None, None, :, None]
    # Kernel taps contributing to each output parity along one axis (None = no tap):
    #   even rows use original kh in {3,1}; odd rows use kh in {4,2,0} (via flip).
    k_sets = {0: (1, 3, None), 1: (0, 2, 4)}
    zeros_tap = jnp.zeros((Cout, Cin), w_flip.dtype)
    blocks = []
    for ph in range(2):
        for pw in range(2):
            taps = []
            for dh in range(3):
                for dw in range(3):
                    kh, kw = k_sets[ph][dh], k_sets[pw][dw]
                    taps.append(zeros_tap if (kh is None or kw is None) else w_flip[kh, kw])
            blocks.append(jnp.concatenate(taps, axis=1))                     # (Cout, 9*Cin)
    w_all = jnp.concatenate(blocks, axis=0).astype(jnp.bfloat16)             # (4*Cout, 9*Cin)
    bias_all = jnp.tile(bias, 4).reshape(4 * Cout, 1).astype(jnp.float32)    # (4*Cout, 1)
    return w_all, bias_all


def upscale_apply(x, w_all, bias_all):
    """Pallas-backed forward with pre-folded params.  x: (N, Cin, H, W) f32, NCHW."""
    N, Cin, H, W = x.shape
    assert w_all.shape[1] == 9 * Cin
    Cout = w_all.shape[0] // 4
    Ho, Wo = 2 * H + 1, 2 * W + 1                        # ConvTranspose2d(k=5,s=2,p=1)

    PH = H + 1                                           # per-phase (padded) rows
    PWp = W + 3                                          # padded row pitch
    L = PH * PWp                                         # valid flat per-phase length (323)
    Lp = ((L + 127) // 128) * 128                        # lane-dense matmul / store width (384)
    s_max = 2 * PWp + 2                                  # largest in-kernel tap offset
    FL = ((s_max + Lp + 127) // 128) * 128               # flat input length; reads stay in bounds

    # ---- input: pad 1 (top/left) + 2 (bottom/right), flatten HW, zero-pad, cast bf16 ----
    x_pad = jnp.pad(x, ((0, 0), (0, 0), (1, 2), (1, 2)))
    x_flat = x_pad.reshape(N, Cin, (H + 3) * (W + 3))
    x_flat = jnp.pad(x_flat, ((0, 0), (0, 0), (0, FL - (H + 3) * (W + 3)))).astype(jnp.bfloat16)

    kernel = functools.partial(upscale_kernel, wp=PWp, lp=Lp)
    cost = pl.CostEstimate(
        flops=2 * N * (4 * Cout) * (9 * Cin) * Lp,
        transcendentals=0,
        bytes_accessed=(N * Cin * FL * 2                     # bf16 input
                        + 4 * Cout * 9 * Cin * 2             # bf16 weights
                        + 4 * Cout * 4                       # f32 bias
                        + N * 4 * Cout * Lp * 2))            # bf16 output slab

    phases = pl.pallas_call(
        kernel,
        out_shape=jax.ShapeDtypeStruct((N, 4 * Cout, Lp), jnp.bfloat16),
        grid=(N,),
        in_specs=[
            pl.BlockSpec((1, Cin, FL), lambda n: (n, 0, 0)),
            pl.BlockSpec((4 * Cout, 9 * Cin), lambda n: (0, 0)),
            pl.BlockSpec((4 * Cout, 1), lambda n: (0, 0)),
        ],
        out_specs=pl.BlockSpec((1, 4 * Cout, Lp), lambda n: (n, 0, 0)),
        compiler_params=pltpu.CompilerParams(dimension_semantics=("parallel",)),
        cost_estimate=cost,
    )(x_flat, w_all, bias_all)

    # ---- layout-only epilogue: split phases, un-flatten rows, drop junk cols, interleave ----
    P = phases[:, :, :L].reshape(N, 2, 2, Cout, PH, PWp)[..., :W + 1]        # (N,2,2,C,H+1,W+1)
    out = jnp.transpose(P, (0, 3, 4, 1, 5, 2)).reshape(N, Cout, 2 * (H + 1), 2 * (W + 1))
    return out[:, :, :Ho, :Wo].astype(jnp.float32)                           # (N, C, 2H+1, 2W+1)


def upscale_forward(x, w_t, b_conv, gamma, beta, run_mean, run_var, *, eps=1e-5):
    """Convenience wrapper: fold params then apply (fold is hoistable when weights are static)."""
    w_all, bias_all = fold_upscale_params(w_t, b_conv, gamma, beta, run_mean, run_var, eps=eps)
    return upscale_apply(x, w_all, bias_all)


def reference_forward(x, w_t, b_conv, gamma, beta, run_mean, run_var,
                      *, eps=1e-5, compute_dtype=jnp.float32):
    """Independent pure-JAX reference (XLA conv with lhs dilation)."""
    K = w_t.shape[2]
    stride, padding = 2, 1
    pad = K - 1 - padding
    scale = gamma / jnp.sqrt(run_var + eps)
    w_oihw = jnp.transpose(w_t, (1, 0, 2, 3))[:, :, ::-1, ::-1] * scale[:, None, None, None]
    y = lax.conv_general_dilated(
        x.astype(compute_dtype), w_oihw.astype(compute_dtype),
        window_strides=(1, 1), padding=[(pad, pad), (pad, pad)],
        lhs_dilation=(stride, stride),
        dimension_numbers=("NCHW", "OIHW", "NCHW"),
        preferred_element_type=jnp.float32)
    y = y + ((b_conv - run_mean) * scale + beta)[None, :, None, None]
    return jnp.where(y >= 0, y, 0.1 * y)


if __name__ == "__main__":
    N, Cin, H, W = 2, 4, 16, 16
    Cout, K = 8, 5

    key = jax.random.PRNGKey(0)
    k_x, k_w, k_b, k_g, k_bt = jax.random.split(key, 5)
    x = jax.random.normal(k_x, (N, Cin, H, W), jnp.float32)
    w_t = 0.1 * jax.random.normal(k_w, (Cin, Cout, K, K), jnp.float32)
    b_conv = 0.05 * jax.random.normal(k_b, (Cout,), jnp.float32)
    gamma = 1.0 + 0.1 * jax.random.normal(k_g, (Cout,), jnp.float32)
    beta = 0.1 * jax.random.normal(k_bt, (Cout,), jnp.float32)
    run_mean = jnp.zeros((Cout,), jnp.float32)
    run_var = jnp.ones((Cout,), jnp.float32)

    # Fold BN/conv params once (hoisted out of the per-forward path), jit the apply.
    w_all, bias_all = fold_upscale_params(w_t, b_conv, gamma, beta, run_mean, run_var)
    out = jax.block_until_ready(jax.jit(upscale_apply)(x, w_all, bias_all))
    assert out.shape == (N, Cout, 2 * H + 1, 2 * W + 1), out.shape

    # Check vs a reference with matching operand numerics (bf16 operands, f32 accum).
    # Error budget: the kernel additionally rounds its phase slab to bf16 at the store,
    # i.e. <= 1/2 bf16 ulp (~0.8% relative; |y| < ~3 here => <~ 8e-3 abs) on top of
    # f32 accumulation-order noise, so the tolerance is 2e-2 (was 1e-3 for f32 output).
    ref_bf16 = jax.block_until_ready(
        reference_forward(x, w_t, b_conv, gamma, beta, run_mean, run_var,
                          compute_dtype=jnp.bfloat16))
    err_bf16 = float(jnp.max(jnp.abs(out - ref_bf16)))
    if err_bf16 > 2e-2:
        raise AssertionError(f"Mismatch vs bf16-matched reference: max abs err {err_bf16}")

    # Sanity check vs the full-f32 reference (bf16 operand rounding + bf16 output rounding).
    ref_f32 = jax.block_until_ready(
        reference_forward(x, w_t, b_conv, gamma, beta, run_mean, run_var,
                          compute_dtype=jnp.float32))
    err_f32 = float(jnp.max(jnp.abs(out - ref_f32)))
    if err_f32 > 4e-2:
        raise AssertionError(f"Mismatch vs f32 reference: max abs err {err_f32}")

    print("KERNEL_OK")
</pallas_src>

<mosaic_0001>
module attributes {stable_mosaic.version = 11 : i64} {
  func.func @upscale_kernel(%arg0: i32, %arg1: memref<1x4x512xbf16, #tpu.memory_space<vmem>>, %arg2: memref<32x36xbf16, #tpu.memory_space<vmem>>, %arg3: memref<32x1xf32, #tpu.memory_space<vmem>>, %arg4: memref<1x32x384xbf16, #tpu.memory_space<vmem>>) attributes {dimension_semantics = [#tpu.dimension_semantics<parallel>], iteration_bounds = array<i64: 2>, scalar_prefetch = 0 : i64, scratch_operands = 0 : i64, tpu.core_type = #tpu.core_type<tc>, window_params = [{transform_indices = @transform_0, window_bounds = array<i64: 1, 4, 512>}, {pipeline_mode = #tpu.pipeline_mode<synchronous>, transform_indices = @transform_1, window_bounds = array<i64: 32, 36>}, {pipeline_mode = #tpu.pipeline_mode<synchronous>, transform_indices = @transform_2, window_bounds = array<i64: 32, 1>}, {transform_indices = @transform_3, window_bounds = array<i64: 1, 32, 384>}]} {
    %c0 = arith.constant 0 : index
    %c0_0 = arith.constant 0 : index
    %c0_1 = arith.constant 0 : index
    %0 = vector.load %arg1[%c0, %c0_0, %c0_1] : memref<1x4x512xbf16, #tpu.memory_space<vmem>>, vector<1x4x384xbf16>
    %1 = vector.shape_cast %0 : vector<1x4x384xbf16> to vector<4x384xbf16>
    %c0_2 = arith.constant 0 : index
    %c0_3 = arith.constant 0 : index
    %c1 = arith.constant 1 : index
    %2 = vector.load %arg1[%c0_2, %c0_3, %c1] : memref<1x4x512xbf16, #tpu.memory_space<vmem>>, vector<1x4x384xbf16>
    %3 = vector.shape_cast %2 : vector<1x4x384xbf16> to vector<4x384xbf16>
    %c0_4 = arith.constant 0 : index
    %c0_5 = arith.constant 0 : index
    %c2 = arith.constant 2 : index
    %4 = vector.load %arg1[%c0_4, %c0_5, %c2] : memref<1x4x512xbf16, #tpu.memory_space<vmem>>, vector<1x4x384xbf16>
    %5 = vector.shape_cast %4 : vector<1x4x384xbf16> to vector<4x384xbf16>
    %c0_6 = arith.constant 0 : index
    %c0_7 = arith.constant 0 : index
    %c19 = arith.constant 19 : index
    %6 = vector.load %arg1[%c0_6, %c0_7, %c19] : memref<1x4x512xbf16, #tpu.memory_space<vmem>>, vector<1x4x384xbf16>
    %7 = vector.shape_cast %6 : vector<1x4x384xbf16> to vector<4x384xbf16>
    %c0_8 = arith.constant 0 : index
    %c0_9 = arith.constant 0 : index
    %c20 = arith.constant 20 : index
    %8 = vector.load %arg1[%c0_8, %c0_9, %c20] : memref<1x4x512xbf16, #tpu.memory_space<vmem>>, vector<1x4x384xbf16>
    %9 = vector.shape_cast %8 : vector<1x4x384xbf16> to vector<4x384xbf16>
    %c0_10 = arith.constant 0 : index
    %c0_11 = arith.constant 0 : index
    %c21 = arith.constant 21 : index
    %10 = vector.load %arg1[%c0_10, %c0_11, %c21] : memref<1x4x512xbf16, #tpu.memory_space<vmem>>, vector<1x4x384xbf16>
    %11 = vector.shape_cast %10 : vector<1x4x384xbf16> to vector<4x384xbf16>
    %c0_12 = arith.constant 0 : index
    %c0_13 = arith.constant 0 : index
    %c38 = arith.constant 38 : index
    %12 = vector.load %arg1[%c0_12, %c0_13, %c38] : memref<1x4x512xbf16, #tpu.memory_space<vmem>>, vector<1x4x384xbf16>
    %13 = vector.shape_cast %12 : vector<1x4x384xbf16> to vector<4x384xbf16>
    %c0_14 = arith.constant 0 : index
    %c0_15 = arith.constant 0 : index
    %c39 = arith.constant 39 : index
    %14 = vector.load %arg1[%c0_14, %c0_15, %c39] : memref<1x4x512xbf16, #tpu.memory_space<vmem>>, vector<1x4x384xbf16>
    %15 = vector.shape_cast %14 : vector<1x4x384xbf16> to vector<4x384xbf16>
    %c0_16 = arith.constant 0 : index
    %c0_17 = arith.constant 0 : index
    %c40 = arith.constant 40 : index
    %16 = vector.load %arg1[%c0_16, %c0_17, %c40] : memref<1x4x512xbf16, #tpu.memory_space<vmem>>, vector<1x4x384xbf16>
    %17 = vector.shape_cast %16 : vector<1x4x384xbf16> to vector<4x384xbf16>
    %18 = tpu.concatenate %1, %3, %5, %7, %9, %11, %13, %15, %17 in 0 : vector<4x384xbf16>, vector<4x384xbf16>, vector<4x384xbf16>, vector<4x384xbf16>, vector<4x384xbf16>, vector<4x384xbf16>, vector<4x384xbf16>, vector<4x384xbf16>, vector<4x384xbf16> -> vector<36x384xbf16>
    %c0_18 = arith.constant 0 : index
    %c0_19 = arith.constant 0 : index
    %19 = vector.load %arg2[%c0_18, %c0_19] : memref<32x36xbf16, #tpu.memory_space<vmem>>, vector<32x36xbf16>
    %cst = arith.constant dense<0.000000e+00> : vector<32x384xf32>
    %20 = tpu.matmul %19, %18, %cst {dimension_numbers = #tpu.dot_dimension_numbers<[1], [0], [0], [1], [0, 0, 1, 1], [], []>} : vector<32x36xbf16>, vector<36x384xbf16>, vector<32x384xf32> -> vector<32x384xf32>
    %c0_20 = arith.constant 0 : index
    %c0_21 = arith.constant 0 : index
    %21 = vector.load %arg3[%c0_20, %c0_21] : memref<32x1xf32, #tpu.memory_space<vmem>>, vector<32x1xf32>
    %22 = vector.broadcast %21 : vector<32x1xf32> to vector<32x384xf32>
    %23 = arith.addf %20, %22 : vector<32x384xf32>
    %cst_22 = arith.constant 0.000000e+00 : f32
    %24 = vector.broadcast %cst_22 : f32 to vector<32x384xf32>
    %25 = arith.cmpf oge, %23, %24 : vector<32x384xf32>
    %cst_23 = arith.constant 1.000000e-01 : f32
    %26 = vector.broadcast %cst_23 : f32 to vector<32x384xf32>
    %27 = arith.mulf %26, %23 : vector<32x384xf32>
    %28 = arith.select %25, %23, %27 : vector<32x384xi1>, vector<32x384xf32>
    %29 = arith.truncf %28 : vector<32x384xf32> to vector<32x384xbf16>
    %c0_24 = arith.constant 0 : index
    %c0_25 = arith.constant 0 : index
    %c0_26 = arith.constant 0 : index
    %30 = vector.load %arg4[%c0_24, %c0_25, %c0_26] : memref<1x32x384xbf16, #tpu.memory_space<vmem>>, vector<1x32x384xbf16>
    %31 = vector.shape_cast %30 : vector<1x32x384xbf16> to vector<32x384xbf16>
    %32 = vector.shape_cast %29 : vector<32x384xbf16> to vector<1x32x384xbf16>
    tpu.vector_store %arg4[%c0_24, %c0_25, %c0_26], %32 {strides = array<i32>} : memref<1x32x384xbf16, #tpu.memory_space<vmem>>, vector<1x32x384xbf16>,
    return
  }
  func.func @transform_0(%arg0: i32) -> (i32, i32, i32) {
    %c0_i32 = arith.constant 0 : i32
    %c0_i32_0 = arith.constant 0 : i32
    %c0_i32_1 = arith.constant 0 : i32
    return %arg0, %c0_i32, %c0_i32_0 : i32, i32, i32
  }
  func.func @transform_1(%arg0: i32) -> (i32, i32) {
    %c0_i32 = arith.constant 0 : i32
    %c0_i32_0 = arith.constant 0 : i32
    %c0_i32_1 = arith.constant 0 : i32
    return %c0_i32, %c0_i32_0 : i32, i32
  }
  func.func @transform_2(%arg0: i32) -> (i32, i32) {
    %c0_i32 = arith.constant 0 : i32
    %c0_i32_0 = arith.constant 0 : i32
    %c0_i32_1 = arith.constant 0 : i32
    return %c0_i32, %c0_i32_0 : i32, i32
  }
  func.func @transform_3(%arg0: i32) -> (i32, i32, i32) {
    %c0_i32 = arith.constant 0 : i32
    %c0_i32_0 = arith.constant 0 : i32
    %c0_i32_1 = arith.constant 0 : i32
    return %arg0, %c0_i32, %c0_i32_0 : i32, i32, i32
  }
}

</mosaic_0001>

<llo_original>
// kernel: upscale_apply.1
$region0: #{upscale_apply.1}
  #allocation0 [shape = 'u32[]', space=smem, size = 0x4, offset = 0x4, fixed_abs, tag = 'smem constant byte address 0x4 - core index']
  #allocation1 [shape = 'u32[72,128]{1,0:T(1,128)}', space=vmem, size = 0x9000, scoped, tag = 'internal scratch']
  %s0 = inlined_call_operand.vmem [shape: bf16[2,4,512], index: 0, kind: input, shape index: {}]
  %s1 = inlined_call_operand.vmem [shape: bf16[32,36], index: 1, kind: input, shape index: {}]
  %s2 = inlined_call_operand.vmem [shape: f32[32,1], index: 2, kind: input, shape index: {}]
  %s3 = inlined_call_operand.vmem [shape: bf16[2,32,384], index: 3, kind: output, shape index: {}]
  %s4 = sld [smem:[#allocation0]]
  $region45: #{upscale_apply.1} parent=0
    _
  %s6 = ssub.s32 1, %s4
  %s7 = scalar_select 0, %s6, %s4
  loop: start=0, step=1, limit=4
  $region2: #{upscale_apply.1} parent=0 // loop_pre_header
    _
  $region3: #{upscale_apply.1} parent=0 // loop_header
    %s9 = sphi 0, %s13
    %p10 = scmp.ge.s32.totalorder %s9, 4
    %s19 = sphi 0, %s21
    %s22 = sphi 0, %s19
    %s23 = sphi 0, %s22
    %s39 = sphi 0, %s23
    %s43 = sphi 0, %s43
    %s45 = sphi 0, %s43
    %s46 = sphi 0, %s45
    %s60 = sphi 0, %s46
    %s64 = sphi 0, %s64
    %s66 = sphi 0, %s64
    %s67 = sphi 0, %s66
    %s81 = sphi 0, %s67
    %s87 = sphi 0, %s89
    %s90 = sphi 0, %s87
    %s91 = sphi 0, %s90
    %s107 = sphi 0, %s91
  $region4: #{upscale_apply.1} parent=0 // loop_header_branch
    %12 = sbr.rel (%p10) target = $region8
  $region5: #{upscale_apply.1} parent=0 // loop_body
    %s14 = ssub.s32 %s9, 1
    %s15 = ssub.s32 %s9, 2
    %s16 = sadd.s32 %s9, 1
    %s17 = ssub.s32 %s9, %s16
    %p18 = scmp.eq.s32.totalorder %s17, 0
    %s20 = sadd.s32 %s19, 1
    %s21 = scalar_select %p18, %s19, %s20
    %p24 = pneg %p18
    %p25 = scmp.eq.s32.totalorder %s9, 1
    %p26 = por %p24, %p25
    %p27 = scmp.ne.s32.totalorder %s19, %s22
    %p28 = scmp.eq.s32.totalorder %s9, 0
    %p29 = por %p27, %p28
    %p30 = scmp.ne.s32.totalorder %s19, %s22
    %p31 = scmp.eq.s32.totalorder %s14, 1
    %p32 = por %p30, %p31
    %p33 = scmp.ne.s32.totalorder %s22, %s23
    %p34 = scmp.eq.s32.totalorder %s14, 0
    %p35 = por %p33, %p34
    %p36 = scmp.ne.s32.totalorder %s22, %s23
    %p37 = scmp.eq.s32.totalorder %s15, 1
    %p38 = por %p36, %p37
    %p40 = scmp.ne.s32.totalorder %s23, %s39
    %p41 = scmp.eq.s32.totalorder %s15, 0
    %p42 = por %p40, %p41
    %s44 = sadd.s32 %s43, 1
    %p47 = scmp.eq.s32.totalorder %s9, 1
    %p48 = scmp.ne.s32.totalorder %s43, %s45
    %p49 = scmp.eq.s32.totalorder %s9, 0
    %p50 = por %p48, %p49
    %p51 = scmp.ne.s32.totalorder %s43, %s45
    %p52 = scmp.eq.s32.totalorder %s14, 1
    %p53 = por %p51, %p52
    %p54 = scmp.ne.s32.totalorder %s45, %s46
    %p55 = scmp.eq.s32.totalorder %s14, 0
    %p56 = por %p54, %p55
    %p57 = scmp.ne.s32.totalorder %s45, %s46
    %p58 = scmp.eq.s32.totalorder %s15, 1
    %p59 = por %p57, %p58
    %p61 = scmp.ne.s32.totalorder %s46, %s60
    %p62 = scmp.eq.s32.totalorder %s15, 0
    %p63 = por %p61, %p62
    %s65 = sadd.s32 %s64, 1
    %p68 = scmp.eq.s32.totalorder %s9, 1
    %p69 = scmp.ne.s32.totalorder %s64, %s66
    %p70 = scmp.eq.s32.totalorder %s9, 0
    %p71 = por %p69, %p70
    %p72 = scmp.ne.s32.totalorder %s64, %s66
    %p73 = scmp.eq.s32.totalorder %s14, 1
    %p74 = por %p72, %p73
    %p75 = scmp.ne.s32.totalorder %s66, %s67
    %p76 = scmp.eq.s32.totalorder %s14, 0
    %p77 = por %p75, %p76
    %p78 = scmp.ne.s32.totalorder %s66, %s67
    %p79 = scmp.eq.s32.totalorder %s15, 1
    %p80 = por %p78, %p79
    %p82 = scmp.ne.s32.totalorder %s67, %s81
    %p83 = scmp.eq.s32.totalorder %s15, 0
    %p84 = por %p82, %p83
    %s85 = ssub.s32 %s9, %s16
    %p86 = scmp.eq.s32.totalorder %s85, 0
    %s88 = sadd.s32 %s87, 1
    %s89 = scalar_select %p86, %s87, %s88
    %p92 = pneg %p86
    %p93 = scmp.eq.s32.totalorder %s9, 1
    %p94 = por %p92, %p93
    %p95 = scmp.ne.s32.totalorder %s87, %s90
    %p96 = scmp.eq.s32.totalorder %s9, 0
    %p97 = por %p95, %p96
    %p98 = scmp.ne.s32.totalorder %s87, %s90
    %p99 = scmp.eq.s32.totalorder %s14, 1
    %p100 = por %p98, %p99
    %p101 = scmp.ne.s32.totalorder %s90, %s91
    %p102 = scmp.eq.s32.totalorder %s14, 0
    %p103 = por %p101, %p102
    %p104 = scmp.ne.s32.totalorder %s90, %s91
    %p105 = scmp.eq.s32.totalorder %s15, 1
    %p106 = por %p104, %p105
    %p108 = scmp.ne.s32.totalorder %s91, %s107
    %p109 = scmp.eq.s32.totalorder %s15, 0
    %p110 = por %p108, %p109
    %p111 = scmp.le.s32.totalorder 1, %s9
    %p112 = scmp.lt.s32.totalorder %s9, 3
    %p113 = pnand %p111, %p112
    %p114 = pneg %p113
    // Predicated region
    $region9: #{upscale_apply.1} parent=5 // pred_check
      _
    $region10: #{upscale_apply.1} parent=5 // pred_check_branch
      %116 = sbr.rel (%p113) target = $region12
    $region11: #{upscale_apply.1} parent=5 // pred_region
      %s117 = ssub.s32 %s9, 1
      // Predicated region
      $region13: #{upscale_apply.1} parent=11 // pred_check
        %p118 = pneg %p56
      $region14: #{upscale_apply.1} parent=11 // pred_check_branch
        %120 = sbr.rel (%p118) target = $region16
      $region15: #{upscale_apply.1} parent=11 // pred_region
        _
      $region16: #{upscale_apply.1} parent=11 // pred_fallthru
        _
      // Predicated region
      $region17: #{upscale_apply.1} parent=11 // pred_check
        %p121 = pneg %p77
      $region18: #{upscale_apply.1} parent=11 // pred_check_branch
        %123 = sbr.rel (%p121) target = $region20
      $region19: #{upscale_apply.1} parent=11 // pred_region
        _
      $region20: #{upscale_apply.1} parent=11 // pred_fallthru
        _
    $region12: #{upscale_apply.1} parent=5 // pred_fallthru
      _
    %p124 = scmp.lt.s32.totalorder %s9, 2
    // Predicated region
    $region21: #{upscale_apply.1} parent=5 // pred_check
      %p125 = pneg %p124
    $region22: #{upscale_apply.1} parent=5 // pred_check_branch
      %127 = sbr.rel (%p125) target = $region24
    $region23: #{upscale_apply.1} parent=5 // pred_region
      // Predicated region
      $region25: #{upscale_apply.1} parent=23 // pred_check
        %p128 = pneg %p29
      $region26: #{upscale_apply.1} parent=23 // pred_check_branch
        %130 = sbr.rel (%p128) target = $region28
      $region27: #{upscale_apply.1} parent=23 // pred_region
        %p131 = scmp.lt.s32.totalorder %s9, 1
        %s132 = scalar_select %p131, %s9, 1
        %s133 = smul.addr %s132, 4
        %s134 = smul.addr %s133, 2
        %s135 = scalar_lea.vmem %s0, %s134
      $region28: #{upscale_apply.1} parent=23 // pred_fallthru
        _
    $region24: #{upscale_apply.1} parent=5 // pred_fallthru
      _
    %p136 = scmp.le.s32.totalorder 1, %s9
    %p137 = scmp.lt.s32.totalorder %s9, 3
    %p138 = pnand %p136, %p137
    %p139 = pneg %p138
    // Predicated region
    $region29: #{upscale_apply.1} parent=5 // pred_check
      _
    $region30: #{upscale_apply.1} parent=5 // pred_check_branch
      %141 = sbr.rel (%p138) target = $region32
    $region31: #{upscale_apply.1} parent=5 // pred_region
      %s142 = ssub.s32 %s9, 1
      %p143 = scmp.lt.s32.totalorder %s14, 1
      %s144 = scalar_select %p143, %s14, 1
      %s145 = smul.addr %s144, 4
      %s146 = smul.addr %s145, 2
      %s147 = scalar_lea.vmem %s0, %s146
      %p148 = pneg %p35
      %p149 = pneg %p32
      %p150 = pneg %p56
      %p151 = pneg %p53
      %p152 = pneg %p77
      %p153 = pneg %p74
      %p154 = pneg %p103
      %p155 = pneg %p100
      %p156 = scmp.lt.s32.totalorder %s14, 1
      %s157 = scalar_select %p156, %s14, 1
      %s158 = smul.addr %s157, 12
      %s159 = smul.addr %s158, 4
      %s160 = scalar_lea.vmem %s3, %s159
      %p161 = scmp.lt.s32.totalorder %s14, 1
      %s162 = scalar_select %p161, %s14, 1
      %s163 = smul.addr %s162, 4
      %s164 = smul.addr %s163, 2
      %s165 = scalar_lea.vmem %s0, %s164
      %p166 = scmp.lt.s32.totalorder %s14, 1
      %s167 = scalar_select %p166, %s14, 1
      %s168 = smul.addr %s167, 12
      %s169 = smul.addr %s168, 4
      %s170 = scalar_lea.vmem %s3, %s169
      %v172 = vld [vmem:[%s165] sm:$0x3f]
      %v173 = vld [vmem:[%s165] sm:$0xff]
      %175 = vst [vmem:[#allocation1] ss:$4 sm:$0xff] %v172
      %v176 = vld.sshfl [vmem:[#allocation1] sm:$0xff pattern:$0x73625140]
      %v177 = vld.sshfl [vmem:[#allocation1 + $0x8] sm:$0xff pattern:$0x73625140]
      %v178 = vld.sshfl [vmem:[#allocation1 + $0x10] sm:$0xff pattern:$0x73625140]
      %s180 = scalar_lea.vmem [#allocation1], 1
      %181 = vst [vmem:[%s180] ss:$4 sm:$0xff] %v173
      %v182 = vld.sshfl [vmem:[#allocation1] sm:$0xff pattern:$0x73625140]
      %v184 = vld.sshfl [vmem:[#allocation1 + $0x8] sm:$0xff pattern:$0x73625140]
      %v186 = vld.sshfl [vmem:[#allocation1 + $0x10] sm:$0xff pattern:$0x73625140]
      %v188 = vld.sshfl [vmem:[#allocation1 + $0x18] sm:$0xff pattern:$0x73625140]
      %190 = vrot.lane.b32.xlu0 %v182, 127
      %v191 = vpop.permute.xlu0 %190
      %192 = vrot.lane.b32.xlu0 %v184, 127
      %v193 = vpop.permute.xlu0 %192
      %194 = vrot.lane.b32.xlu0 %v186, 127
      %v195 = vpop.permute.xlu0 %194
      %196 = vrot.lane.b32.xlu0 %v188, 127
      %v197 = vpop.permute.xlu0 %196
      %vm198 = vcmask 1039360
      %v199 = vsel %vm198, %v191, %v193
      %v200 = vsel %vm198, %v193, %v195
      %v201 = vsel %vm198, %v195, %v197
      %s202 = scalar_lea.vmem [#allocation1], 2
      %203 = vst [vmem:[%s202] ss:$4 sm:$0xff] %v173
      %v204 = vld.sshfl [vmem:[#allocation1] sm:$0xff pattern:$0x73625140]
      %v206 = vld.sshfl [vmem:[#allocation1 + $0x8] sm:$0xff pattern:$0x73625140]
      %v208 = vld.sshfl [vmem:[#allocation1 + $0x10] sm:$0xff pattern:$0x73625140]
      %v210 = vld.sshfl [vmem:[#allocation1 + $0x18] sm:$0xff pattern:$0x73625140]
      %212 = vrot.lane.b32.xlu0 %v204, 126
      %v213 = vpop.permute.xlu0 %212
      %214 = vrot.lane.b32.xlu0 %v206, 126
      %v215 = vpop.permute.xlu0 %214
      %216 = vrot.lane.b32.xlu0 %v208, 126
      %v217 = vpop.permute.xlu0 %216
      %218 = vrot.lane.b32.xlu0 %v210, 126
      %v219 = vpop.permute.xlu0 %218
      %vm220 = vcmask 1031168
      %v221 = vsel %vm220, %v213, %v215
      %v222 = vsel %vm220, %v215, %v217
      %v223 = vsel %vm220, %v217, %v219
      %s224 = scalar_lea.vmem [#allocation1], 3
      %225 = vst [vmem:[%s224] ss:$4 sm:$0xff] %v173
      %v226 = vld.sshfl [vmem:[#allocation1] sm:$0xff pattern:$0x73625140]
      %v228 = vld.sshfl [vmem:[#allocation1 + $0x8] sm:$0xff pattern:$0x73625140]
      %v230 = vld.sshfl [vmem:[#allocation1 + $0x10] sm:$0xff pattern:$0x73625140]
      %v232 = vld.sshfl [vmem:[#allocation1 + $0x18] sm:$0xff pattern:$0x73625140]
      %234 = vrot.lane.b32.xlu0 %v226, 109
      %v235 = vpop.permute.xlu0 %234
      %236 = vrot.lane.b32.xlu0 %v228, 109
      %v237 = vpop.permute.xlu0 %236
      %238 = vrot.lane.b32.xlu0 %v230, 109
      %v239 = vpop.permute.xlu0 %238
      %240 = vrot.lane.b32.xlu0 %v232, 109
      %v241 = vpop.permute.xlu0 %240
      %vm242 = vcmask 891904
      %v243 = vsel %vm242, %v235, %v237
      %v244 = vsel %vm242, %v237, %v239
      %v245 = vsel %vm242, %v239, %v241
      %246 = vst [vmem:[#allocation1] ss:$4 sm:$0xff] %v173
      %v247 = vld.sshfl [vmem:[#allocation1] sm:$0xff pattern:$0x73625140]
      %v249 = vld.sshfl [vmem:[#allocation1 + $0x8] sm:$0xff pattern:$0x73625140]
      %v251 = vld.sshfl [vmem:[#allocation1 + $0x10] sm:$0xff pattern:$0x73625140]
      %v253 = vld.sshfl [vmem:[#allocation1 + $0x18] sm:$0xff pattern:$0x73625140]
      %255 = vrot.lane.b32.xlu0 %v247, 108
      %v256 = vpop.permute.xlu0 %255
      %257 = vrot.lane.b32.xlu0 %v249, 108
      %v258 = vpop.permute.xlu0 %257
      %259 = vrot.lane.b32.xlu0 %v251, 108
      %v260 = vpop.permute.xlu0 %259
      %261 = vrot.lane.b32.xlu0 %v253, 108
      %v262 = vpop.permute.xlu0 %261
      %vm263 = vcmask 883712
      %v264 = vsel %vm263, %v256, %v258
      %v265 = vsel %vm263, %v258, %v260
      %v266 = vsel %vm263, %v260, %v262
      %s267 = scalar_lea.vmem [#allocation1], 1
      %268 = vst [vmem:[%s267] ss:$4 sm:$0xff] %v173
      %v269 = vld.sshfl [vmem:[#allocation1] sm:$0xff pattern:$0x73625140]
      %v271 = vld.sshfl [vmem:[#allocation1 + $0x8] sm:$0xff pattern:$0x73625140]
      %v273 = vld.sshfl [vmem:[#allocation1 + $0x10] sm:$0xff pattern:$0x73625140]
      %v275 = vld.sshfl [vmem:[#allocation1 + $0x18] sm:$0xff pattern:$0x73625140]
      %277 = vrot.lane.b32.xlu0 %v269, 107
      %v278 = vpop.permute.xlu0 %277
      %279 = vrot.lane.b32.xlu0 %v271, 107
      %v280 = vpop.permute.xlu0 %279
      %281 = vrot.lane.b32.xlu0 %v273, 107
      %v282 = vpop.permute.xlu0 %281
      %283 = vrot.lane.b32.xlu0 %v275, 107
      %v284 = vpop.permute.xlu0 %283
      %vm285 = vcmask 875520
      %v286 = vsel %vm285, %v278, %v280
      %v287 = vsel %vm285, %v280, %v282
      %v288 = vsel %vm285, %v282, %v284
      %s289 = scalar_lea.vmem [#allocation1], 2
      %290 = vst [vmem:[%s289] ss:$4 sm:$0xff] %v173
      %v291 = vld.sshfl [vmem:[#allocation1] sm:$0xff pattern:$0x73625140]
      %v293 = vld.sshfl [vmem:[#allocation1 + $0x8] sm:$0xff pattern:$0x73625140]
      %v295 = vld.sshfl [vmem:[#allocation1 + $0x10] sm:$0xff pattern:$0x73625140]
      %v297 = vld.sshfl [vmem:[#allocation1 + $0x18] sm:$0xff pattern:$0x73625140]
      %299 = vrot.lane.b32.xlu0 %v291, 90
      %v300 = vpop.permute.xlu0 %299
      %301 = vrot.lane.b32.xlu0 %v293, 90
      %v302 = vpop.permute.xlu0 %301
      %303 = vrot.lane.b32.xlu0 %v295, 90
      %v304 = vpop.permute.xlu0 %303
      %305 = vrot.lane.b32.xlu0 %v297, 90
      %v306 = vpop.permute.xlu0 %305
      %vm307 = vcmask 736256
      %v308 = vsel %vm307, %v300, %v302
      %v309 = vsel %vm307, %v302, %v304
      %v310 = vsel %vm307, %v304, %v306
      %s311 = scalar_lea.vmem [#allocation1], 3
      %312 = vst [vmem:[%s311] ss:$4 sm:$0xff] %v173
      %v313 = vld.sshfl [vmem:[#allocation1] sm:$0xff pattern:$0x73625140]
      %v315 = vld.sshfl [vmem:[#allocation1 + $0x8] sm:$0xff pattern:$0x73625140]
      %v317 = vld.sshfl [vmem:[#allocation1 + $0x10] sm:$0xff pattern:$0x73625140]
      %v319 = vld.sshfl [vmem:[#allocation1 + $0x18] sm:$0xff pattern:$0x73625140]
      %321 = vrot.lane.b32.xlu0 %v313, 89
      %v322 = vpop.permute.xlu0 %321
      %323 = vrot.lane.b32.xlu0 %v315, 89
      %v324 = vpop.permute.xlu0 %323
      %325 = vrot.lane.b32.xlu0 %v317, 89
      %v326 = vpop.permute.xlu0 %325
      %327 = vrot.lane.b32.xlu0 %v319, 89
      %v328 = vpop.permute.xlu0 %327
      %vm329 = vcmask 728064
      %v330 = vsel %vm329, %v322, %v324
      %v331 = vsel %vm329, %v324, %v326
      %v332 = vsel %vm329, %v326, %v328
      %333 = vst [vmem:[#allocation1] ss:$4 sm:$0xff] %v173
      %v334 = vld.sshfl [vmem:[#allocation1] sm:$0xff pattern:$0x73625140]
      %v336 = vld.sshfl [vmem:[#allocation1 + $0x8] sm:$0xff pattern:$0x73625140]
      %v338 = vld.sshfl [vmem:[#allocation1 + $0x10] sm:$0xff pattern:$0x73625140]
      %v340 = vld.sshfl [vmem:[#allocation1 + $0x18] sm:$0xff pattern:$0x73625140]
      %342 = vrot.lane.b32.xlu0 %v334, 88
      %v343 = vpop.permute.xlu0 %342
      %344 = vrot.lane.b32.xlu0 %v336, 88
      %v345 = vpop.permute.xlu0 %344
      %346 = vrot.lane.b32.xlu0 %v338, 88
      %v347 = vpop.permute.xlu0 %346
      %348 = vrot.lane.b32.xlu0 %v340, 88
      %v349 = vpop.permute.xlu0 %348
      %vm350 = vcmask 719872
      %v351 = vsel %vm350, %v343, %v345
      %v352 = vsel %vm350, %v345, %v347
      %v353 = vsel %vm350, %v347, %v349
      %vm354 = vcmask 1041408
      %v356 = vsel %vm354, %v176, %v199
      %v358 = vsel %vm354, %v177, %v200
      %v360 = vsel %vm354, %v178, %v201
      %vm361 = vcmask 1043456
      %v363 = vsel %vm361, %v356, %v221
      %v365 = vsel %vm361, %v358, %v222
      %v367 = vsel %vm361, %v360, %v223
      %vm368 = vcmask 1045504
      %v370 = vsel %vm368, %v363, %v243
      %v373 = vsel %vm368, %v365, %v244
      %v376 = vsel %vm368, %v367, %v245
      %v380 = vsel %vm354, %v264, %v286
      %v383 = vsel %vm354, %v265, %v287
      %v386 = vsel %vm354, %v266, %v288
      %v388 = vsel %vm361, %v380, %v308
      %v390 = vsel %vm361, %v383, %v309
      %v392 = vsel %vm361, %v386, %v310
      %v394 = vsel %vm368, %v388, %v330
      %v397 = vsel %vm368, %v390, %v331
      %v400 = vsel %vm368, %v392, %v332
      %v402 = vld [vmem:[%s1] sm:$0xf]
      %v403 = vld [vmem:[%s1 + $0x4] sm:$0xf]
      %v404 = vld [vmem:[%s1 + $0x8] sm:$0xf]
      %v405 = vld [vmem:[%s1 + $0xc] sm:$0xf]
      %v406 = vld [vmem:[%s2] sm:$0xff]
      %v407 = vld [vmem:[%s2 + $0x8] sm:$0xff]
      %v408 = vld [vmem:[%s2 + $0x10] sm:$0xff]
      %v409 = vld [vmem:[%s2 + $0x18] sm:$0xff]
      %411 = vset.pattern.permute.xlu0 0
      %412 = vperm.xlu0 %411, %v406
      %v413 = vpop.permute.xlu0 %412
      %416 = vset.pattern.permute.xlu0 0
      %417 = vperm.xlu0 %416, %v407
      %v418 = vpop.permute.xlu0 %417
      %421 = vset.pattern.permute.xlu0 0
      %422 = vperm.xlu0 %421, %v408
      %v423 = vpop.permute.xlu0 %422
      %426 = vset.pattern.permute.xlu0 0
      %427 = vperm.xlu0 %426, %v409
      %v428 = vpop.permute.xlu0 %427
      %v434 = vunpack.c.l.b16 %v402
      %v435 = vunpack.c.l.b16 %v403
      %v436 = vunpack.c.l.b16 %v404
      %v437 = vunpack.c.l.b16 %v405
      %v438 = vpack.c.b16 %v435, %v434
      %v439 = vpack.c.b16 %v437, %v436
      %vm440 = vcmask 293888
      %v442 = vsel %vm440, %v438, 0
      %v445 = vsel %vm440, %v439, 0
      %v448 = vsel %vm354, %v351, 0
      %v451 = vsel %vm354, %v352, 0
      %v454 = vsel %vm354, %v353, 0
      %456 = vmatpush.bf16.msra.mxu0 0
      %457 = vmatpush.bf16.msra.mxu0 0
      %458 = vmatpush.bf16.msra.mxu0 0
      %459 = vmatpush.bf16.msra.mxu0 0
      %460 = vmatpush.bf16.msra.mxu0 0
      %461 = vmatpush.bf16.msra.mxu0 %v448
      %462 = vmatpush.bf16.msra.mxu0 %v394
      %463 = vmatpush.bf16.msra.mxu0 %v370
      %464 = vmatmul.bf16.gmra.mxu0 %v442
      %v465 = vpop.f32.mrf.mxu0
      %v466 = vadd.f32 %v413, %v465
      %v467 = vpop.f32.mrf.mxu0
      %v468 = vadd.f32 %v418, %v467
      %469 = vmatmul.bf16.gmra.mxu0 %v445
      %v470 = vpop.f32.mrf.mxu0
      %v471 = vadd.f32 %v423, %v470
      %v472 = vpop.f32.mrf.mxu0
      %v473 = vadd.f32 %v428, %v472
      %474 = vdwg.mxu0
      %475 = vmatpush.bf16.msra.mxu0 0
      %476 = vmatpush.bf16.msra.mxu0 0
      %477 = vmatpush.bf16.msra.mxu0 0
      %478 = vmatpush.bf16.msra.mxu0 0
      %479 = vmatpush.bf16.msra.mxu0 0
      %480 = vmatpush.bf16.msra.mxu0 %v451
      %481 = vmatpush.bf16.msra.mxu0 %v397
      %482 = vmatpush.bf16.msra.mxu0 %v373
      %483 = vmatmul.bf16.gmra.mxu0 %v442
      %v484 = vpop.f32.mrf.mxu0
      %v485 = vadd.f32 %v413, %v484
      %v486 = vpop.f32.mrf.mxu0
      %v487 = vadd.f32 %v418, %v486
      %488 = vmatmul.bf16.gmra.mxu0 %v445
      %v489 = vpop.f32.mrf.mxu0
      %v490 = vadd.f32 %v423, %v489
      %v491 = vpop.f32.mrf.mxu0
      %v492 = vadd.f32 %v428, %v491
      %493 = vdwg.mxu0
      %494 = vmatpush.bf16.msra.mxu0 0
      %495 = vmatpush.bf16.msra.mxu0 0
      %496 = vmatpush.bf16.msra.mxu0 0
      %497 = vmatpush.bf16.msra.mxu0 0
      %498 = vmatpush.bf16.msra.mxu0 0
      %499 = vmatpush.bf16.msra.mxu0 %v454
      %500 = vmatpush.bf16.msra.mxu0 %v400
      %501 = vmatpush.bf16.msra.mxu0 %v376
      %502 = vmatmul.bf16.gmra.mxu0 %v442
      %v503 = vpop.f32.mrf.mxu0
      %v504 = vadd.f32 %v413, %v503
      %v505 = vpop.f32.mrf.mxu0
      %v506 = vadd.f32 %v418, %v505
      %507 = vmatmul.bf16.gmra.mxu0 %v445
      %v508 = vpop.f32.mrf.mxu0
      %v509 = vadd.f32 %v423, %v508
      %v510 = vpop.f32.mrf.mxu0
      %v511 = vadd.f32 %v428, %v510
      %512 = vdwg.mxu0
      %vm513 = vcmp.ge.f32.partialorder %v466, 0.0
      %vm514 = vcmp.ge.f32.partialorder %v485, 0.0
      %vm515 = vcmp.ge.f32.partialorder %v504, 0.0
      %vm516 = vcmp.ge.f32.partialorder %v468, 0.0
      %vm517 = vcmp.ge.f32.partialorder %v487, 0.0
      %vm518 = vcmp.ge.f32.partialorder %v506, 0.0
      %vm519 = vcmp.ge.f32.partialorder %v471, 0.0
      %vm520 = vcmp.ge.f32.partialorder %v490, 0.0
      %vm521 = vcmp.ge.f32.partialorder %v509, 0.0
      %vm522 = vcmp.ge.f32.partialorder %v473, 0.0
      %vm523 = vcmp.ge.f32.partialorder %v492, 0.0
      %vm524 = vcmp.ge.f32.partialorder %v511, 0.0
      %v525 = vmul.f32 %v466, 0.1
      %v526 = vmul.f32 %v485, 0.1
      %v527 = vmul.f32 %v504, 0.1
      %v528 = vmul.f32 %v468, 0.1
      %v529 = vmul.f32 %v487, 0.1
      %v530 = vmul.f32 %v506, 0.1
      %v531 = vmul.f32 %v471, 0.1
      %v532 = vmul.f32 %v490, 0.1
      %v533 = vmul.f32 %v509, 0.1
      %v534 = vmul.f32 %v473, 0.1
      %v535 = vmul.f32 %v492, 0.1
      %v536 = vmul.f32 %v511, 0.1
      %v537 = vsel %vm513, %v466, %v525
      %v538 = vsel %vm514, %v485, %v526
      %v539 = vsel %vm515, %v504, %v527
      %v540 = vsel %vm516, %v468, %v528
      %v541 = vsel %vm517, %v487, %v529
      %v542 = vsel %vm518, %v506, %v530
      %v543 = vsel %vm519, %v471, %v531
      %v544 = vsel %vm520, %v490, %v532
      %v545 = vsel %vm521, %v509, %v533
      %v546 = vsel %vm522, %v473, %v534
      %v547 = vsel %vm523, %v492, %v535
      %v548 = vsel %vm524, %v511, %v536
      %v549 = vpack.c.bf16 %v538, %v537
      %v550 = vpack.c.bf16 %v539, %v539
      %v551 = vpack.c.bf16 %v541, %v540
      %v552 = vpack.c.bf16 %v542, %v542
      %v553 = vpack.c.bf16 %v544, %v543
      %v554 = vpack.c.bf16 %v545, %v545
      %v555 = vpack.c.bf16 %v547, %v546
      %v556 = vpack.c.bf16 %v548, %v548
      %557 = vst [vmem:[%s170] sm:$0xff] %v549
      %558 = vst [vmem:[%s170 + $0x8] sm:$0xf] %v550
      %559 = vst [vmem:[%s170 + $0xc] sm:$0xff] %v551
      %560 = vst [vmem:[%s170 + $0x14] sm:$0xf] %v552
      %561 = vst [vmem:[%s170 + $0x18] sm:$0xff] %v553
      %562 = vst [vmem:[%s170 + $0x20] sm:$0xf] %v554
      %563 = vst [vmem:[%s170 + $0x24] sm:$0xff] %v555
      %564 = vst [vmem:[%s170 + $0x2c] sm:$0xf] %v556
      %p565 = scmp.lt.s32.totalorder %s14, 1
      %s566 = scalar_select %p565, %s14, 1
      %s567 = smul.addr %s566, 12
      %s568 = smul.addr %s567, 4
      %s569 = scalar_lea.vmem %s3, %s568
      // Predicated region
      $region33: #{upscale_apply.1} parent=31 // pred_check
        %p570 = pneg %p100
      $region34: #{upscale_apply.1} parent=31 // pred_check_branch
        %572 = sbr.rel (%p570) target = $region36
      $region35: #{upscale_apply.1} parent=31 // pred_region
        _
      $region36: #{upscale_apply.1} parent=31 // pred_fallthru
        _
    $region32: #{upscale_apply.1} parent=5 // pred_fallthru
      _
    %p573 = scmp.le.s32.totalorder 2, %s9
    // Predicated region
    $region37: #{upscale_apply.1} parent=5 // pred_check
      %p574 = pneg %p573
    $region38: #{upscale_apply.1} parent=5 // pred_check_branch
      %576 = sbr.rel (%p574) target = $region40
    $region39: #{upscale_apply.1} parent=5 // pred_region
      %s577 = ssub.s32 %s9, 2
      // Predicated region
      $region41: #{upscale_apply.1} parent=39 // pred_check
        %p578 = pneg %p106
      $region42: #{upscale_apply.1} parent=39 // pred_check_branch
        %580 = sbr.rel (%p578) target = $region44
      $region43: #{upscale_apply.1} parent=39 // pred_region
        %p581 = scmp.lt.s32.totalorder %s15, 1
        %s582 = scalar_select %p581, %s15, 1
        %s583 = smul.addr %s582, 12
        %s584 = smul.addr %s583, 4
        %s585 = scalar_lea.vmem %s3, %s584
      $region44: #{upscale_apply.1} parent=39 // pred_fallthru
        _
    $region40: #{upscale_apply.1} parent=5 // pred_fallthru
      _
  $region6: #{upscale_apply.1} parent=0 // loop_footer
    %s13 = sadd.s32 1, %s9
  $region7: #{upscale_apply.1} parent=0 // loop_footer_branch
    %8 = sbr.rel target = $region3
  $region8: #{upscale_apply.1} parent=0 // loop_exit
    _

</llo_original>
